<compile_context>
chip_gen: v6e
topology: v6e:2x2x1
jax: 0.10.0
libtpu: 0.0.40
codegen_flags: <defaults>
</compile_context>

<pallas_src>
import math
import numpy as np
import jax
import jax.numpy as jnp
from jax.experimental import pallas as pl
from jax.experimental.pallas import tpu as pltpu


# ------------------------------------------------------------------
# Config (mirrors GraphStructured.__init__ arguments, small shapes)
# ------------------------------------------------------------------
MAX_CONN = 3
DIM = 32           # must be multiple of 4 (sincos emb)
OUTPUT_DIM = 8
DEPTH = 2
TEMPERATURE = 10000
BATCH = 2
# graph_json edges: [[node1_order_id, port], [edge_order_id, node2_order_id]]
GRAPH_JSON = {"edges": [
    [[0, 0], [3, 1]],   # node0 --edge3 (port0)-- node1
    [[1, 1], [4, 2]],   # node1 --edge4 (port1)-- node2
]}


def _round_up(a, m):
    return ((a + m - 1) // m) * m


def build_graph_structure(graph_json, max_conn, dim, temperature):
    """Pure-python/numpy replica of the __init__ buffer construction.

    Produces raw gather indices / incidence matrices (used by the pure-JAX
    reference) plus the constant matmul operands for the batch-on-sublanes,
    flattened (node|edge, feature)-on-lanes kernel layout.
    """
    seen, edge_start, edge_end, node_ids, edge_ids, ports = set(), [], [], set(), [], []
    for [[n1, port], [eid, n2]] in graph_json["edges"]:
        canon = (n1, eid, n2) if n1 < n2 else (n2, n1)
        if canon not in seen:
            seen.add(canon)
            edge_start.append(n1); edge_end.append(n2)
            edge_ids.append(eid); ports.append(port + 1)
            node_ids.add(n1); node_ids.add(n2)
    node_ids = sorted(node_ids)
    n_nodes, n_edges = len(node_ids), len(edge_ids)
    n_elt = n_nodes + n_edges
    assert dim % 4 == 0, "feature dimension must be multiple of 4 for sincos emb"

    # sin/cos positional embedding matrix (replicates the torch meshgrid/rearrange quirks)
    h, w = n_elt, max_conn + 1
    xg, yg = np.meshgrid(np.arange(h), np.arange(w), indexing="xy")      # shape (w, h)
    qc = dim // 4
    omega = 1.0 / temperature ** (np.arange(qc) / (qc - 1))
    y_e = (yg.flatten()[:, None] * omega[None, :]).reshape(h, w, qc)
    x_e = (xg.flatten()[:, None] * omega[None, :]).reshape(h, w, qc)
    emb = np.concatenate(
        [np.sin(x_e), np.cos(x_e), np.sin(y_e), np.cos(y_e)], axis=2
    ).astype(np.float32)

    nfeats_posemb = emb[np.array(node_ids), 0, :]                        # (n_nodes, dim)
    efeats_posemb = emb[np.array(edge_ids), np.array(ports), :]          # (n_edges, dim)

    # choice_matrix[k, d] = x[start_k + d % seg_len_k]  (tile + truncate)
    increment = dim // n_elt
    remainder = dim - increment * n_elt
    increments = list(range(increment + remainder, dim + 1, increment))
    starts = [0] + increments[:-1]
    gather_idx = np.zeros((n_elt, dim), dtype=np.int32)
    for k, (s, e) in enumerate(zip(starts, increments)):
        ln = e - s
        gather_idx[k, :] = s + (np.arange(dim) % ln)
    node_gather = gather_idx[np.array(node_ids)]                         # (n_nodes, dim)
    edge_gather = gather_idx[np.array(edge_ids)]                         # (n_edges, dim)

    # directed graph: src = start+end, dst = end+start (re-labelled 0..n_nodes-1)
    unit = {o: i for i, o in enumerate(node_ids)}
    src = np.array([unit[o] for o in edge_start + edge_end], dtype=np.int32)
    dst = np.array([unit[o] for o in edge_end + edge_start], dtype=np.int32)
    n_dir = len(src)
    S = np.zeros((n_dir, n_nodes), dtype=np.float32)   # source incidence (edge <- src node)
    D = np.zeros((n_nodes, n_dir), dtype=np.float32)   # dest incidence  (node <- edge)
    S[np.arange(n_dir), src] = 1.0
    D[dst, np.arange(n_dir)] = 1.0

    # ---- constant operands for the flattened (B, elems*dim) kernel layout ----
    nd, ed = n_nodes * dim, n_dir * dim
    eye_d = np.eye(dim, dtype=np.float32)

    # one-hot gather matrices: (x @ Gn)[b, i*dim + d] = x[b, node_gather[i, d]]
    Gn = np.zeros((dim, nd), dtype=np.float32)
    Gn[node_gather.ravel(), np.arange(nd)] = 1.0
    edge_gather_dir = np.concatenate([edge_gather, edge_gather], axis=0)   # (n_dir, dim)
    Ge = np.zeros((dim, ed), dtype=np.float32)
    Ge[edge_gather_dir.ravel(), np.arange(ed)] = 1.0

    pn = nfeats_posemb.reshape(1, nd)                                     # (1, n_nodes*dim)
    pe = np.tile(efeats_posemb, (2, 1)).reshape(1, ed)                    # (1, n_dir*dim)

    # incidence matmuls lifted to the flattened layout
    SrcMat = np.kron(S.T, eye_d).astype(np.float32)                       # (nd, ed)
    DstMat = np.kron(D.T, eye_d).astype(np.float32)                       # (ed, nd)
    # AvgPooling over nodes as a matmul (divides by the true n_nodes)
    PoolMat = np.kron(np.full((n_nodes, 1), 1.0 / n_nodes, np.float32), eye_d)  # (nd, dim)

    return dict(n_nodes=n_nodes, n_edges=n_edges, n_dir=n_dir, dim=dim,
                nfeats_posemb=nfeats_posemb, efeats_posemb=efeats_posemb,
                node_gather=node_gather, edge_gather=edge_gather, S=S, D=D,
                Gn=Gn, Ge=Ge, pn=pn, pe=pe,
                SrcMat=SrcMat, DstMat=DstMat, PoolMat=PoolMat)


# ------------------------------------------------------------------
# One-time operand prep (hoisted out of the per-call forward; review item #8)
# ------------------------------------------------------------------
def prepare_operands(params, struct):
    dim = struct["dim"]
    n_nodes, n_dir = struct["n_nodes"], struct["n_dir"]
    nd, ed = n_nodes * dim, n_dir * dim
    depth = params["W"].shape[0]
    out_dim = params["Wo"].shape[1]

    Gn = jnp.asarray(struct["Gn"]); Ge = jnp.asarray(struct["Ge"])
    pn = jnp.asarray(struct["pn"]); pe = jnp.asarray(struct["pe"])
    SrcMat = jnp.asarray(struct["SrcMat"]); DstMat = jnp.asarray(struct["DstMat"])
    PoolMat = jnp.asarray(struct["PoolMat"])

    # Block-diagonal conv weights: (h @ Wblk[l])[b, i*dim+f] = sum_d h[b,i*dim+d] W[l,d,f]
    eye_n = jnp.eye(n_nodes, dtype=jnp.float32)
    Wblk = jnp.einsum("ij,ldf->lidjf", eye_n, params["W"]).reshape(depth, nd, nd)
    # Fold the destination scatter into the conv weight:  (msg @ DstMat) @ Wblk == msg @ DstW
    DstW = jnp.einsum("xn,lnf->lxf", DstMat, Wblk)                        # (depth, ed, nd)
    WW = jnp.concatenate([Wblk, DstW], axis=1)                            # (depth, nd+ed, nd)

    # Fused feature-construction + layer-0 source gather:
    #   x @ [Ge | Gn@SrcMat | Gn]  ->  [e | src0 | h0]   (128 / 128 / 96 lanes, tile aligned)
    GnSrc = Gn @ SrcMat                                                    # (dim, ed), still 0/1
    pnSrc = pn @ SrcMat                                                    # (1, ed)
    G = jnp.concatenate([Ge, GnSrc, Gn], axis=1)                           # (dim, 2*ed+nd)
    P = jnp.concatenate([pe, pnSrc, pn], axis=1)                           # (1, 2*ed+nd)

    # AvgPool folded into the output projection.
    WoBig = PoolMat @ params["Wo"]                                          # (nd, out_dim)

    # Packed biases: rows 0..depth-1 = node-tiled conv biases, row depth = output bias.
    bblk = jnp.tile(params["b"], (1, 1, n_nodes))                           # (depth, 1, nd)
    BIAS = jnp.zeros((depth + 1, 1, nd), jnp.float32)
    BIAS = BIAS.at[:depth].set(bblk)
    BIAS = BIAS.at[depth, 0, :out_dim].set(params["bo"][0])

    bf16 = jnp.bfloat16
    return dict(
        G=G.astype(bf16),            # structural 0/1 -> exact in bf16
        P=P.astype(jnp.float32),
        SrcMat=SrcMat.astype(bf16),  # structural 0/1 -> exact in bf16
        WW=WW.astype(bf16),
        BIAS=BIAS,
        WoBig=WoBig.astype(bf16),
        depth=depth, nd=nd, ed=ed, dim=dim, out_dim=out_dim,
    )


# ------------------------------------------------------------------
# Pallas kernel: feature build + DEPTH x GINEConv + AvgPool + Linear
# for one batch tile; constants stay resident across grid steps.
# ------------------------------------------------------------------
def _make_gine_kernel(depth, ed, nd, out_dim):
    bf16 = jnp.bfloat16

    def kernel(x_ref, g_ref, p_ref, src_ref, ww_ref, bias_ref, wo_ref, out_ref):
        xb = x_ref[...].astype(bf16)                                       # (TB, dim)
        # single fused matmul: edge feats | layer-0 src feats | node feats
        y = jnp.dot(xb, g_ref[...], preferred_element_type=jnp.float32) + p_ref[...]
        e   = y[:, :ed]                                                    # (TB, ed)
        src = y[:, ed:2 * ed]                                              # (TB, ed)
        h   = y[:, 2 * ed:]                                                # (TB, nd)

        for l in range(depth):   # static unrolled loop over conv layers
            if l > 0:
                src = jnp.dot(h.astype(bf16), src_ref[...],
                              preferred_element_type=jnp.float32)
            # GINEConv (eps=0): h <- W * (h + sum_in ReLU(h_src + e)) + b, with the
            # destination scatter folded into DstW so the two dots are independent.
            msg = jnp.maximum(src + e, 0.0)
            w_l = ww_ref[l]                                                # (nd+ed, nd) bf16
            h = (jnp.dot(h.astype(bf16), w_l[:nd],
                         preferred_element_type=jnp.float32)
                 + jnp.dot(msg.astype(bf16), w_l[nd:],
                           preferred_element_type=jnp.float32)
                 + bias_ref[l])

        # AvgPooling already folded into wo_ref (PoolMat @ Wo); one store per tile.
        bo = bias_ref[depth][:, :out_dim]
        out_ref[...] = (jnp.dot(h.astype(bf16), wo_ref[...],
                                preferred_element_type=jnp.float32) + bo)
    return kernel


def graph_structured_forward(x, ops, batch_tile=128):
    B, dim = x.shape
    nd, ed = ops["nd"], ops["ed"]
    depth, out_dim = ops["depth"], ops["out_dim"]
    gw = 2 * ed + nd

    # Pad the batch to a multiple of 8 (f32 sublane) and tile it with a grid axis.
    tb = min(batch_tile, _round_up(B, 8))
    bpad = _round_up(B, tb)
    xp = x if bpad == B else jnp.pad(x, ((0, bpad - B), (0, 0)))

    out = pl.pallas_call(
        _make_gine_kernel(depth, ed, nd, out_dim),
        out_shape=jax.ShapeDtypeStruct((bpad, out_dim), jnp.float32),
        grid_spec=pltpu.PrefetchScalarGridSpec(
            num_scalar_prefetch=0,
            grid=(bpad // tb,),                               # batch-tile grid axis
            in_specs=[
                pl.BlockSpec((tb, dim),            lambda i: (i, 0)),      # x (streamed)
                pl.BlockSpec((dim, gw),            lambda i: (0, 0)),      # [Ge|GnSrc|Gn]
                pl.BlockSpec((1, gw),              lambda i: (0, 0)),      # [pe|pnSrc|pn]
                pl.BlockSpec((nd, ed),             lambda i: (0, 0)),      # kron(S^T, I)
                pl.BlockSpec((depth, nd + ed, nd), lambda i: (0, 0, 0)),   # [Wblk; DstW]
                pl.BlockSpec((depth + 1, 1, nd),   lambda i: (0, 0, 0)),   # packed biases
                pl.BlockSpec((nd, out_dim),        lambda i: (0, 0)),      # PoolMat @ Wo
            ],
            out_specs=pl.BlockSpec((tb, out_dim), lambda i: (i, 0)),
        ),
        compiler_params=pltpu.CompilerParams(dimension_semantics=("parallel",)),
    )(xp, ops["G"], ops["P"], ops["SrcMat"], ops["WW"], ops["BIAS"], ops["WoBig"])
    return out[:B]


# ------------------------------------------------------------------
# Pure-JAX f32 reference (gather/einsum formulation) for a correctness check
# ------------------------------------------------------------------
def reference_forward(x, params, struct):
    nfeats = x[:, struct["node_gather"]] + struct["nfeats_posemb"][None]
    ef = x[:, struct["edge_gather"]] + struct["efeats_posemb"][None]
    efeats = jnp.concatenate([ef, ef], axis=1)
    S, D = struct["S"], struct["D"]
    h = nfeats
    for l in range(params["W"].shape[0]):
        src_feat = jnp.einsum("en,bnd->bed", S, h)
        msg = jax.nn.relu(src_feat + efeats)
        agg = jnp.einsum("ne,bed->bnd", D, msg)
        h = jnp.einsum("bnd,df->bnf", h + agg, params["W"][l]) + params["b"][l][None]
    pooled = h.mean(axis=1)
    return pooled @ params["Wo"] + params["bo"][0]


if __name__ == "__main__":
    struct_np = build_graph_structure(GRAPH_JSON, MAX_CONN, DIM, TEMPERATURE)
    struct = {k: (jnp.asarray(v) if isinstance(v, np.ndarray) else v)
              for k, v in struct_np.items()}

    key = jax.random.PRNGKey(0)
    kx, kw, kb, kwo, kbo = jax.random.split(key, 5)
    x = jax.random.normal(kx, (BATCH, DIM), dtype=jnp.float32)
    # Deterministic synthetic params. Linear weights stored pre-transposed (in, out)
    # so the kernel computes y = h @ W + b  (== torch's x @ W_t.T + b).
    params = dict(
        W=jax.random.normal(kw, (DEPTH, DIM, DIM), jnp.float32) / math.sqrt(DIM),
        b=jax.random.normal(kb, (DEPTH, 1, DIM), jnp.float32) * 0.01,
        Wo=jax.random.normal(kwo, (DIM, OUTPUT_DIM), jnp.float32) / math.sqrt(DIM),
        bo=jax.random.normal(kbo, (1, OUTPUT_DIM), jnp.float32) * 0.01,
    )

    # Constant / weight folding done once, outside the per-call forward.
    ops = prepare_operands(params, struct)

    fwd = jax.jit(lambda xx: graph_structured_forward(xx, ops))
    out = jax.block_until_ready(fwd(x))

    ref = reference_forward(x, params, struct)
    # bf16 MXU inputs with f32 accumulation: structural matrices are exact,
    # activations/weights carry ~0.4% rounding per dot -> relaxed tolerance.
    np.testing.assert_allclose(np.asarray(out), np.asarray(ref), rtol=1e-1, atol=1e-1)
    print("KERNEL_OK")
</pallas_src>

<mosaic_0001>
module attributes {stable_mosaic.version = 11 : i64} {
  func.func @kernel(%arg0: i32, %arg1: memref<8x32xf32, #tpu.memory_space<vmem>>, %arg2: memref<32x352xbf16, #tpu.memory_space<vmem>>, %arg3: memref<1x352xf32, #tpu.memory_space<vmem>>, %arg4: memref<96x128xbf16, #tpu.memory_space<vmem>>, %arg5: memref<2x224x96xbf16, #tpu.memory_space<vmem>>, %arg6: memref<3x1x96xf32, #tpu.memory_space<vmem>>, %arg7: memref<96x8xbf16, #tpu.memory_space<vmem>>, %arg8: memref<8x8xf32, #tpu.memory_space<vmem>>) attributes {dimension_semantics = [#tpu.dimension_semantics<parallel>], iteration_bounds = array<i64: 1>, scalar_prefetch = 0 : i64, scratch_operands = 0 : i64, tpu.core_type = #tpu.core_type<tc>, window_params = [{transform_indices = @transform_0, window_bounds = array<i64: 8, 32>}, {pipeline_mode = #tpu.pipeline_mode<synchronous>, transform_indices = @transform_1, window_bounds = array<i64: 32, 352>}, {pipeline_mode = #tpu.pipeline_mode<synchronous>, transform_indices = @transform_2, window_bounds = array<i64: 1, 352>}, {pipeline_mode = #tpu.pipeline_mode<synchronous>, transform_indices = @transform_3, window_bounds = array<i64: 96, 128>}, {pipeline_mode = #tpu.pipeline_mode<synchronous>, transform_indices = @transform_4, window_bounds = array<i64: 2, 224, 96>}, {pipeline_mode = #tpu.pipeline_mode<synchronous>, transform_indices = @transform_5, window_bounds = array<i64: 3, 1, 96>}, {pipeline_mode = #tpu.pipeline_mode<synchronous>, transform_indices = @transform_6, window_bounds = array<i64: 96, 8>}, {transform_indices = @transform_7, window_bounds = array<i64: 8, 8>}]} {
    %c0 = arith.constant 0 : index
    %c0_0 = arith.constant 0 : index
    %0 = vector.load %arg1[%c0, %c0_0] : memref<8x32xf32, #tpu.memory_space<vmem>>, vector<8x32xf32>
    %1 = arith.truncf %0 : vector<8x32xf32> to vector<8x32xbf16>
    %c0_1 = arith.constant 0 : index
    %c0_2 = arith.constant 0 : index
    %2 = vector.load %arg2[%c0_1, %c0_2] : memref<32x352xbf16, #tpu.memory_space<vmem>>, vector<32x352xbf16>
    %cst = arith.constant dense<0.000000e+00> : vector<8x352xf32>
    %3 = tpu.matmul %1, %2, %cst {dimension_numbers = #tpu.dot_dimension_numbers<[1], [0], [0], [1], [0, 0, 1, 1], [], []>} : vector<8x32xbf16>, vector<32x352xbf16>, vector<8x352xf32> -> vector<8x352xf32>
    %c0_3 = arith.constant 0 : index
    %c0_4 = arith.constant 0 : index
    %4 = vector.load %arg3[%c0_3, %c0_4] : memref<1x352xf32, #tpu.memory_space<vmem>>, vector<1x352xf32>
    %5 = vector.broadcast %4 : vector<1x352xf32> to vector<8x352xf32>
    %6 = arith.addf %3, %5 : vector<8x352xf32>
    %7 = vector.extract_strided_slice %6 {offsets = [0, 0], sizes = [8, 128], strides = [1, 1]} : vector<8x352xf32> to vector<8x128xf32>
    %8 = vector.extract_strided_slice %6 {offsets = [0, 128], sizes = [8, 128], strides = [1, 1]} : vector<8x352xf32> to vector<8x128xf32>
    %9 = vector.extract_strided_slice %6 {offsets = [0, 256], sizes = [8, 96], strides = [1, 1]} : vector<8x352xf32> to vector<8x96xf32>
    %10 = arith.addf %8, %7 : vector<8x128xf32>
    %cst_5 = arith.constant 0.000000e+00 : f32
    %11 = vector.broadcast %cst_5 : f32 to vector<8x128xf32>
    %12 = arith.maximumf %10, %11 : vector<8x128xf32>
    %c0_6 = arith.constant 0 : index
    %c0_7 = arith.constant 0 : index
    %c0_8 = arith.constant 0 : index
    %13 = vector.load %arg5[%c0_6, %c0_7, %c0_8] : memref<2x224x96xbf16, #tpu.memory_space<vmem>>, vector<1x224x96xbf16>
    %14 = vector.shape_cast %13 : vector<1x224x96xbf16> to vector<224x96xbf16>
    %15 = arith.truncf %9 : vector<8x96xf32> to vector<8x96xbf16>
    %16 = vector.extract_strided_slice %14 {offsets = [0, 0], sizes = [96, 96], strides = [1, 1]} : vector<224x96xbf16> to vector<96x96xbf16>
    %cst_9 = arith.constant dense<0.000000e+00> : vector<8x96xf32>
    %17 = tpu.matmul %15, %16, %cst_9 {dimension_numbers = #tpu.dot_dimension_numbers<[1], [0], [0], [1], [0, 0, 1, 1], [], []>} : vector<8x96xbf16>, vector<96x96xbf16>, vector<8x96xf32> -> vector<8x96xf32>
    %18 = arith.truncf %12 : vector<8x128xf32> to vector<8x128xbf16>
    %19 = vector.extract_strided_slice %14 {offsets = [96, 0], sizes = [128, 96], strides = [1, 1]} : vector<224x96xbf16> to vector<128x96xbf16>
    %cst_10 = arith.constant dense<0.000000e+00> : vector<8x96xf32>
    %20 = tpu.matmul %18, %19, %cst_10 {dimension_numbers = #tpu.dot_dimension_numbers<[1], [0], [0], [1], [0, 0, 1, 1], [], []>} : vector<8x128xbf16>, vector<128x96xbf16>, vector<8x96xf32> -> vector<8x96xf32>
    %21 = arith.addf %17, %20 : vector<8x96xf32>
    %c0_11 = arith.constant 0 : index
    %c0_12 = arith.constant 0 : index
    %c0_13 = arith.constant 0 : index
    %22 = vector.load %arg6[%c0_11, %c0_12, %c0_13] : memref<3x1x96xf32, #tpu.memory_space<vmem>>, vector<1x1x96xf32>
    %23 = vector.shape_cast %22 : vector<1x1x96xf32> to vector<1x96xf32>
    %24 = vector.broadcast %23 : vector<1x96xf32> to vector<8x96xf32>
    %25 = arith.addf %21, %24 : vector<8x96xf32>
    %26 = arith.truncf %25 : vector<8x96xf32> to vector<8x96xbf16>
    %c0_14 = arith.constant 0 : index
    %c0_15 = arith.constant 0 : index
    %27 = vector.load %arg4[%c0_14, %c0_15] : memref<96x128xbf16, #tpu.memory_space<vmem>>, vector<96x128xbf16>
    %cst_16 = arith.constant dense<0.000000e+00> : vector<8x128xf32>
    %28 = tpu.matmul %26, %27, %cst_16 {dimension_numbers = #tpu.dot_dimension_numbers<[1], [0], [0], [1], [0, 0, 1, 1], [], []>} : vector<8x96xbf16>, vector<96x128xbf16>, vector<8x128xf32> -> vector<8x128xf32>
    %29 = arith.addf %28, %7 : vector<8x128xf32>
    %cst_17 = arith.constant 0.000000e+00 : f32
    %30 = vector.broadcast %cst_17 : f32 to vector<8x128xf32>
    %31 = arith.maximumf %29, %30 : vector<8x128xf32>
    %c1 = arith.constant 1 : index
    %c0_18 = arith.constant 0 : index
    %c0_19 = arith.constant 0 : index
    %32 = vector.load %arg5[%c1, %c0_18, %c0_19] : memref<2x224x96xbf16, #tpu.memory_space<vmem>>, vector<1x224x96xbf16>
    %33 = vector.shape_cast %32 : vector<1x224x96xbf16> to vector<224x96xbf16>
    %34 = arith.truncf %25 : vector<8x96xf32> to vector<8x96xbf16>
    %35 = vector.extract_strided_slice %33 {offsets = [0, 0], sizes = [96, 96], strides = [1, 1]} : vector<224x96xbf16> to vector<96x96xbf16>
    %cst_20 = arith.constant dense<0.000000e+00> : vector<8x96xf32>
    %36 = tpu.matmul %34, %35, %cst_20 {dimension_numbers = #tpu.dot_dimension_numbers<[1], [0], [0], [1], [0, 0, 1, 1], [], []>} : vector<8x96xbf16>, vector<96x96xbf16>, vector<8x96xf32> -> vector<8x96xf32>
    %37 = arith.truncf %31 : vector<8x128xf32> to vector<8x128xbf16>
    %38 = vector.extract_strided_slice %33 {offsets = [96, 0], sizes = [128, 96], strides = [1, 1]} : vector<224x96xbf16> to vector<128x96xbf16>
    %cst_21 = arith.constant dense<0.000000e+00> : vector<8x96xf32>
    %39 = tpu.matmul %37, %38, %cst_21 {dimension_numbers = #tpu.dot_dimension_numbers<[1], [0], [0], [1], [0, 0, 1, 1], [], []>} : vector<8x128xbf16>, vector<128x96xbf16>, vector<8x96xf32> -> vector<8x96xf32>
    %40 = arith.addf %36, %39 : vector<8x96xf32>
    %c1_22 = arith.constant 1 : index
    %c0_23 = arith.constant 0 : index
    %c0_24 = arith.constant 0 : index
    %41 = vector.load %arg6[%c1_22, %c0_23, %c0_24] : memref<3x1x96xf32, #tpu.memory_space<vmem>>, vector<1x1x96xf32>
    %42 = vector.shape_cast %41 : vector<1x1x96xf32> to vector<1x96xf32>
    %43 = vector.broadcast %42 : vector<1x96xf32> to vector<8x96xf32>
    %44 = arith.addf %40, %43 : vector<8x96xf32>
    %c2 = arith.constant 2 : index
    %c0_25 = arith.constant 0 : index
    %c0_26 = arith.constant 0 : index
    %45 = vector.load %arg6[%c2, %c0_25, %c0_26] : memref<3x1x96xf32, #tpu.memory_space<vmem>>, vector<1x1x96xf32>
    %46 = vector.shape_cast %45 : vector<1x1x96xf32> to vector<1x96xf32>
    %47 = vector.extract_strided_slice %46 {offsets = [0, 0], sizes = [1, 8], strides = [1, 1]} : vector<1x96xf32> to vector<1x8xf32>
    %48 = arith.truncf %44 : vector<8x96xf32> to vector<8x96xbf16>
    %c0_27 = arith.constant 0 : index
    %c0_28 = arith.constant 0 : index
    %49 = vector.load %arg7[%c0_27, %c0_28] : memref<96x8xbf16, #tpu.memory_space<vmem>>, vector<96x8xbf16>
    %cst_29 = arith.constant dense<0.000000e+00> : vector<8x8xf32>
    %50 = tpu.matmul %48, %49, %cst_29 {dimension_numbers = #tpu.dot_dimension_numbers<[1], [0], [0], [1], [0, 0, 1, 1], [], []>} : vector<8x96xbf16>, vector<96x8xbf16>, vector<8x8xf32> -> vector<8x8xf32>
    %51 = vector.broadcast %47 : vector<1x8xf32> to vector<8x8xf32>
    %52 = arith.addf %50, %51 : vector<8x8xf32>
    %c0_30 = arith.constant 0 : index
    %c0_31 = arith.constant 0 : index
    %53 = vector.load %arg8[%c0_30, %c0_31] : memref<8x8xf32, #tpu.memory_space<vmem>>, vector<8x8xf32>
    tpu.vector_store %arg8[%c0_30, %c0_31], %52 {strides = array<i32>} : memref<8x8xf32, #tpu.memory_space<vmem>>, vector<8x8xf32>,
    return
  }
  func.func @transform_0(%arg0: i32) -> (i32, i32) {
    %c0_i32 = arith.constant 0 : i32
    %c0_i32_0 = arith.constant 0 : i32
    return %arg0, %c0_i32 : i32, i32
  }
  func.func @transform_1(%arg0: i32) -> (i32, i32) {
    %c0_i32 = arith.constant 0 : i32
    %c0_i32_0 = arith.constant 0 : i32
    %c0_i32_1 = arith.constant 0 : i32
    return %c0_i32, %c0_i32_0 : i32, i32
  }
  func.func @transform_2(%arg0: i32) -> (i32, i32) {
    %c0_i32 = arith.constant 0 : i32
    %c0_i32_0 = arith.constant 0 : i32
    %c0_i32_1 = arith.constant 0 : i32
    return %c0_i32, %c0_i32_0 : i32, i32
  }
  func.func @transform_3(%arg0: i32) -> (i32, i32) {
    %c0_i32 = arith.constant 0 : i32
    %c0_i32_0 = arith.constant 0 : i32
    %c0_i32_1 = arith.constant 0 : i32
    return %c0_i32, %c0_i32_0 : i32, i32
  }
  func.func @transform_4(%arg0: i32) -> (i32, i32, i32) {
    %c0_i32 = arith.constant 0 : i32
    %c0_i32_0 = arith.constant 0 : i32
    %c0_i32_1 = arith.constant 0 : i32
    %c0_i32_2 = arith.constant 0 : i32
    return %c0_i32, %c0_i32_0, %c0_i32_1 : i32, i32, i32
  }
  func.func @transform_5(%arg0: i32) -> (i32, i32, i32) {
    %c0_i32 = arith.constant 0 : i32
    %c0_i32_0 = arith.constant 0 : i32
    %c0_i32_1 = arith.constant 0 : i32
    %c0_i32_2 = arith.constant 0 : i32
    return %c0_i32, %c0_i32_0, %c0_i32_1 : i32, i32, i32
  }
  func.func @transform_6(%arg0: i32) -> (i32, i32) {
    %c0_i32 = arith.constant 0 : i32
    %c0_i32_0 = arith.constant 0 : i32
    %c0_i32_1 = arith.constant 0 : i32
    return %c0_i32, %c0_i32_0 : i32, i32
  }
  func.func @transform_7(%arg0: i32) -> (i32, i32) {
    %c0_i32 = arith.constant 0 : i32
    %c0_i32_0 = arith.constant 0 : i32
    return %arg0, %c0_i32 : i32, i32
  }
}

</mosaic_0001>

<llo_original>
// kernel: _lambda_.1
$region0: #{_lambda_.1}
  #allocation0 [shape = 'u32[]', space=smem, size = 0x4, offset = 0x4, fixed_abs, tag = 'smem constant byte address 0x4 - core index']
  #allocation1 [shape = 'u32[144,128]{1,0:T(1,128)}', space=vmem, size = 0x12000, scoped, tag = 'internal scratch']
  %s0 = inlined_call_operand.vmem [shape: f32[8,32], index: 0, kind: input, shape index: {}]
  %s1 = inlined_call_operand.hbm [shape: bf16[32,352], index: 1, kind: input, shape index: {}]
  %s2 = inlined_call_operand.vmem [shape: f32[1,352], index: 2, kind: input, shape index: {}]
  %s3 = inlined_call_operand.hbm [shape: bf16[96,128], index: 3, kind: input, shape index: {}]
  %s4 = inlined_call_operand.hbm [shape: bf16[2,224,96], index: 4, kind: input, shape index: {}]
  %s5 = inlined_call_operand.vmem [shape: f32[3,1,96], index: 5, kind: input, shape index: {}]
  %s6 = inlined_call_operand.hbm [shape: bf16[96,8], index: 6, kind: input, shape index: {}]
  %s7 = inlined_call_operand.vmem [shape: f32[8,8], index: 7, kind: output, shape index: {}]
  %s8 = sld [smem:[#allocation0]]
  $region54: #{_lambda_.1} parent=0
    _
  %s10 = ssub.s32 1, %s8
  %s11 = scalar_select 0, %s10, %s8
  $region1: #{_lambda_.1} parent=0
    #allocation2 [shape = 'u8[24576]{0}', space=vmem, size = 0x6000, scoped, tag = 'input window, operand 1, single buffered']
    #allocation3 [shape = 's32[1]{0}', space=sflag, size = 0x4, scoped, tag = 'scoped memory for _lambda_.1']
    #allocation4 [shape = 'u8[24576]{0}', space=vmem, size = 0x6000, scoped, tag = 'input window, operand 3, single buffered']
    #allocation5 [shape = 's32[1]{0}', space=sflag, size = 0x4, scoped, tag = 'scoped memory for _lambda_.1']
    #allocation6 [shape = 'u8[114688]{0}', space=vmem, size = 0x1c000, scoped, tag = 'input window, operand 4, single buffered']
    #allocation7 [shape = 'u8[24576]{0}', space=vmem, size = 0x6000, scoped, tag = 'input window, operand 6, single buffered']
    #allocation8 [shape = 's32[1]{0}', space=sflag, size = 0x4, scoped, tag = 'scoped memory for _lambda_.1']
    %12 = vsyncpa [#allocation3], 0
    %13 = vsyncpa [#allocation5], 0
    %14 = vsyncpa [#allocation8], 0
    // Predicated region
    $region2: #{_lambda_.1} parent=1 // pred_check
      _
    $region3: #{_lambda_.1} parent=1 // pred_check_branch
      %16 = sbr.rel (0) target = $region5
    $region4: #{_lambda_.1} parent=1 // pred_region
      _
    $region5: #{_lambda_.1} parent=1 // pred_fallthru
      _
    // Predicated region
    $region6: #{_lambda_.1} parent=1 // pred_check
      _
    $region7: #{_lambda_.1} parent=1 // pred_check_branch
      %18 = sbr.rel (0) target = $region9
    $region8: #{_lambda_.1} parent=1 // pred_region
      %s20 = ssub.s32 768, 768
      %21 = vsyncadd [#allocation3], %s20
      %s22 = sshll.u32 [#allocation2], 4
      %s23 = int_to_ptr.vmem [resolvable:$true] %s22
      %28 = dma.hbm_to_vmem [thread:$0]  %s1, 768, %s23, [#allocation3], 192, 192, 12
    $region9: #{_lambda_.1} parent=1 // pred_fallthru
      _
    // Predicated region
    $region10: #{_lambda_.1} parent=1 // pred_check
      _
    $region11: #{_lambda_.1} parent=1 // pred_check_branch
      %30 = sbr.rel (0) target = $region13
    $region12: #{_lambda_.1} parent=1 // pred_region
      _
    $region13: #{_lambda_.1} parent=1 // pred_fallthru
      _
    // Predicated region
    $region14: #{_lambda_.1} parent=1 // pred_check
      _
    $region15: #{_lambda_.1} parent=1 // pred_check_branch
      %32 = sbr.rel (0) target = $region17
    $region16: #{_lambda_.1} parent=1 // pred_region
      %s34 = ssub.s32 768, 768
      %35 = vsyncadd [#allocation5], %s34
      %s36 = sshll.u32 [#allocation4], 4
      %s37 = int_to_ptr.vmem [resolvable:$true] %s36
      %42 = dma.hbm_to_vmem [thread:$0]  %s3, 768, %s37, [#allocation5], 64, 64, 4
    $region17: #{_lambda_.1} parent=1 // pred_fallthru
      _
    // Predicated region
    $region18: #{_lambda_.1} parent=1 // pred_check
      _
    $region19: #{_lambda_.1} parent=1 // pred_check_branch
      %44 = sbr.rel (0) target = $region21
    $region20: #{_lambda_.1} parent=1 // pred_region
      %s46 = ssub.s32 3584, 3584
      %47 = vsyncadd [#allocation5], %s46
      %s48 = sshll.u32 [#allocation6], 4
      %s49 = int_to_ptr.vmem [resolvable:$true] %s48
      %54 = dma.hbm_to_vmem [thread:$0]  %s4, 3584, %s49, [#allocation5], 64, 64, 4
    $region21: #{_lambda_.1} parent=1 // pred_fallthru
      _
    // Predicated region
    $region22: #{_lambda_.1} parent=1 // pred_check
      _
    $region23: #{_lambda_.1} parent=1 // pred_check_branch
      %56 = sbr.rel (0) target = $region25
    $region24: #{_lambda_.1} parent=1 // pred_region
      _
    $region25: #{_lambda_.1} parent=1 // pred_fallthru
      _
    // Predicated region
    $region26: #{_lambda_.1} parent=1 // pred_check
      _
    $region27: #{_lambda_.1} parent=1 // pred_check_branch
      %58 = sbr.rel (0) target = $region29
    $region28: #{_lambda_.1} parent=1 // pred_region
      %s60 = ssub.s32 768, 768
      %61 = vsyncadd [#allocation8], %s60
      %s62 = sshll.u32 [#allocation7], 4
      %s63 = int_to_ptr.vmem [resolvable:$true] %s62
      %68 = dma.hbm_to_vmem [thread:$0]  %s6, 768, %s63, [#allocation8], 64, 64, 4
    $region29: #{_lambda_.1} parent=1 // pred_fallthru
      _
    // Predicated region
    $region30: #{_lambda_.1} parent=1 // pred_check
      _
    $region31: #{_lambda_.1} parent=1 // pred_check_branch
      %70 = sbr.rel (0) target = $region33
    $region32: #{_lambda_.1} parent=1 // pred_region
      %71 = dma.done [#allocation3], 768
    $region33: #{_lambda_.1} parent=1 // pred_fallthru
      _
    // Predicated region
    $region34: #{_lambda_.1} parent=1 // pred_check
      _
    $region35: #{_lambda_.1} parent=1 // pred_check_branch
      %73 = sbr.rel (0) target = $region37
    $region36: #{_lambda_.1} parent=1 // pred_region
      %74 = dma.done [#allocation5], 768
    $region37: #{_lambda_.1} parent=1 // pred_fallthru
      _
    // Predicated region
    $region38: #{_lambda_.1} parent=1 // pred_check
      _
    $region39: #{_lambda_.1} parent=1 // pred_check_branch
      %76 = sbr.rel (0) target = $region41
    $region40: #{_lambda_.1} parent=1 // pred_region
      %77 = dma.done [#allocation5], 3584
    $region41: #{_lambda_.1} parent=1 // pred_fallthru
      _
    // Predicated region
    $region42: #{_lambda_.1} parent=1 // pred_check
      _
    $region43: #{_lambda_.1} parent=1 // pred_check_branch
      %79 = sbr.rel (0) target = $region45
    $region44: #{_lambda_.1} parent=1 // pred_region
      %80 = dma.done [#allocation8], 768
    $region45: #{_lambda_.1} parent=1 // pred_fallthru
      _
    %v82 = vld [vmem:[%s0] sm:$0xff]
    %v83 = vpack.c.bf16 %v82, %v82
    %v84 = vld [vmem:[#allocation2] sm:$0xff]
    %v85 = vld [vmem:[#allocation2 + $0x8] sm:$0xf]
    %v86 = vld [vmem:[#allocation2 + $0xc] sm:$0xff]
    %v87 = vld [vmem:[#allocation2 + $0x14] sm:$0xf]
    %v88 = vld [vmem:[#allocation2 + $0x18] sm:$0xff]
    %v89 = vld [vmem:[#allocation2 + $0x20] sm:$0xf]
    %v90 = vld [vmem:[#allocation2 + $0x24] sm:$0xff]
    %v91 = vld [vmem:[#allocation2 + $0x2c] sm:$0xf]
    %v92 = vld [vmem:[%s2] sm:$0x7]
    %v94 = vlaneseq
    %v95 = vshrl.u32 %v94, 7
    %v96 = vsub.s32 0, %v95
    %v97 = vrot.slane %v92, %v96
    %v98 = vlaneseq
    %v99 = vshrl.u32 %v98, 7
    %v100 = vsub.s32 1, %v99
    %v101 = vrot.slane %v92, %v100
    %v102 = vlaneseq
    %v103 = vshrl.u32 %v102, 7
    %v104 = vsub.s32 2, %v103
    %v105 = vrot.slane %v92, %v104
    %v117 = vunpack.c.l.b16 %v84
    %v118 = vunpack.c.h.b16 %v84
    %v119 = vunpack.c.l.b16 %v85
    %v120 = vunpack.c.l.b16 %v86
    %v121 = vunpack.c.h.b16 %v86
    %v122 = vunpack.c.l.b16 %v87
    %v123 = vunpack.c.l.b16 %v88
    %v124 = vunpack.c.h.b16 %v88
    %v125 = vunpack.c.l.b16 %v89
    %v126 = vunpack.c.l.b16 %v90
    %v127 = vunpack.c.h.b16 %v90
    %v128 = vunpack.c.l.b16 %v91
    %v129 = vpack.c.b16 %v120, %v117
    %v130 = vpack.c.b16 %v121, %v118
    %v131 = vpack.c.b16 %v122, %v119
    %v132 = vpack.c.b16 %v126, %v123
    %v133 = vpack.c.b16 %v127, %v124
    %v134 = vpack.c.b16 %v128, %v125
    %vm141 = vcmask 261120
    %v143 = vsel %vm141, %v83, 0
    %145 = vmatprep.subr.bf16.mxu0 0
    %146 = vmatpush1.bf16.msra.mxu0 0
    %147 = vmatprep.subr.bf16.mxu0 0
    %148 = vmatpush1.bf16.msra.mxu0 0
    %149 = vmatprep.subr.bf16.mxu0 0
    %150 = vmatpush1.bf16.msra.mxu0 0
    %151 = vmatprep.subr.bf16.mxu0 0
    %152 = vmatpush1.bf16.msra.mxu0 0
    %153 = vmatprep.subr.bf16.mxu0 0
    %154 = vmatpush1.bf16.msra.mxu0 0
    %155 = vmatprep.subr.bf16.mxu0 0
    %156 = vmatpush1.bf16.msra.mxu0 0
    %157 = vmatprep.subr.bf16.mxu0 %v133
    %158 = vmatpush1.bf16.msra.mxu0 %v132
    %159 = vmatprep.subr.bf16.mxu0 %v130
    %160 = vmatpush1.bf16.msra.mxu0 %v129
    %161 = vmatprep.subr.bf16.mxu0 0
    %162 = vmatpush2.bf16.msra.mxu0 0
    %163 = vmatprep.subr.bf16.mxu0 0
    %164 = vmatpush2.bf16.msra.mxu0 0
    %165 = vmatprep.subr.bf16.mxu0 0
    %166 = vmatpush2.bf16.msra.mxu0 0
    %167 = vmatprep.subr.bf16.mxu0 0
    %168 = vmatpush2.bf16.msra.mxu0 0
    %169 = vmatprep.subr.bf16.mxu0 0
    %170 = vmatpush2.bf16.msra.mxu0 0
    %171 = vmatprep.subr.bf16.mxu0 0
    %172 = vmatpush2.bf16.msra.mxu0 0
    %173 = vmatprep.subr.bf16.mxu0 0
    %174 = vmatpush2.bf16.msra.mxu0 0
    %175 = vmatprep.subr.bf16.mxu0 0
    %176 = vmatpush2.bf16.msra.mxu0 0
    %177 = vmatprep.mubr.bf16.mxu0 0
    %178 = vmatmul.mubr.bf16.gmra.mxu0 %v143
    %v179 = vpop.f32.mrf.mxu0
    %v180 = vadd.f32 %v97, %v179
    %v181 = vpop.f32.mrf.mxu0
    %v182 = vadd.f32 %v101, %v181
    %v183 = vpop.f32.mrf.mxu0
    %v184 = vpop.f32.mrf.mxu0
    %185 = vdwg.mxu0
    %186 = vmatprep.subr.bf16.mxu0 0
    %187 = vmatpush1.bf16.msra.mxu0 0
    %188 = vmatprep.subr.bf16.mxu0 0
    %189 = vmatpush1.bf16.msra.mxu0 0
    %190 = vmatprep.subr.bf16.mxu0 0
    %191 = vmatpush1.bf16.msra.mxu0 0
    %192 = vmatprep.subr.bf16.mxu0 0
    %193 = vmatpush1.bf16.msra.mxu0 0
    %194 = vmatprep.subr.bf16.mxu0 0
    %195 = vmatpush1.bf16.msra.mxu0 0
    %196 = vmatprep.subr.bf16.mxu0 0
    %197 = vmatpush1.bf16.msra.mxu0 0
    %198 = vmatprep.subr.bf16.mxu0 0
    %199 = vmatpush1.bf16.msra.mxu0 %v134
    %200 = vmatprep.subr.bf16.mxu0 0
    %201 = vmatpush1.bf16.msra.mxu0 %v131
    %202 = vmatprep.subr.bf16.mxu0 0
    %203 = vmatpush2.bf16.msra.mxu0 0
    %204 = vmatprep.subr.bf16.mxu0 0
    %205 = vmatpush2.bf16.msra.mxu0 0
    %206 = vmatprep.subr.bf16.mxu0 0
    %207 = vmatpush2.bf16.msra.mxu0 0
    %208 = vmatprep.subr.bf16.mxu0 0
    %209 = vmatpush2.bf16.msra.mxu0 0
    %210 = vmatprep.subr.bf16.mxu0 0
    %211 = vmatpush2.bf16.msra.mxu0 0
    %212 = vmatprep.subr.bf16.mxu0 0
    %213 = vmatpush2.bf16.msra.mxu0 0
    %214 = vmatprep.subr.bf16.mxu0 0
    %215 = vmatpush2.bf16.msra.mxu0 0
    %216 = vmatprep.subr.bf16.mxu0 0
    %217 = vmatpush2.bf16.msra.mxu0 0
    %218 = vmatprep.mubr.bf16.mxu0 0
    %219 = vmatmul.mubr.bf16.gmra.mxu0 %v143
    %v220 = vpop.f32.mrf.mxu0
    %v221 = vadd.f32 %v105, %v220
    %v222 = vpop.f32.mrf.mxu0
    %v223 = vpop.f32.mrf.mxu0
    %v224 = vpop.f32.mrf.mxu0
    %225 = vdwg.mxu0
    %v226 = vadd.f32 %v182, %v180
    %v227 = vmax.f32 %v226, 0.0
    %v228 = vld [vmem:[#allocation6] sm:$0xf]
    %v229 = vld [vmem:[#allocation6 + $0x4] sm:$0xf]
    %v230 = vld [vmem:[#allocation6 + $0x8] sm:$0xf]
    %v231 = vld [vmem:[#allocation6 + $0xc] sm:$0xf]
    %v232 = vld [vmem:[#allocation6 + $0x10] sm:$0xf]
    %v233 = vld [vmem:[#allocation6 + $0x14] sm:$0xf]
    %v234 = vld [vmem:[#allocation6 + $0x18] sm:$0xf]
    %v235 = vld [vmem:[#allocation6 + $0x1c] sm:$0xf]
    %v236 = vld [vmem:[#allocation6 + $0x20] sm:$0xf]
    %v237 = vld [vmem:[#allocation6 + $0x24] sm:$0xf]
    %v238 = vld [vmem:[#allocation6 + $0x28] sm:$0xf]
    %v239 = vld [vmem:[#allocation6 + $0x2c] sm:$0xf]
    %v240 = vld [vmem:[#allocation6 + $0x30] sm:$0xf]
    %v241 = vld [vmem:[#allocation6 + $0x34] sm:$0xf]
    %v242 = vld [vmem:[#allocation6 + $0x38] sm:$0xf]
    %v243 = vld [vmem:[#allocation6 + $0x3c] sm:$0xf]
    %v244 = vld [vmem:[#allocation6 + $0x40] sm:$0xf]
    %v245 = vld [vmem:[#allocation6 + $0x44] sm:$0xf]
    %v246 = vld [vmem:[#allocation6 + $0x48] sm:$0xf]
    %v247 = vld [vmem:[#allocation6 + $0x4c] sm:$0xf]
    %v248 = vld [vmem:[#allocation6 + $0x50] sm:$0xf]
    %v249 = vld [vmem:[#allocation6 + $0x54] sm:$0xf]
    %v250 = vld [vmem:[#allocation6 + $0x58] sm:$0xf]
    %v251 = vld [vmem:[#allocation6 + $0x5c] sm:$0xf]
    %v252 = vld [vmem:[#allocation6 + $0x60] sm:$0xf]
    %v253 = vld [vmem:[#allocation6 + $0x64] sm:$0xf]
    %v254 = vld [vmem:[#allocation6 + $0x68] sm:$0xf]
    %v255 = vld [vmem:[#allocation6 + $0x6c] sm:$0xf]
    %v256 = vpack.c.bf16 %v221, %v221
    %v257 = vpack.c.bf16 %v227, %v227
    %v274 = vunpack.c.l.b16 %v240
    %v275 = vunpack.c.l.b16 %v241
    %v276 = vunpack.c.l.b16 %v242
    %v277 = vunpack.c.l.b16 %v243
    %v278 = vunpack.c.l.b16 %v244
    %v279 = vunpack.c.l.b16 %v245
    %v280 = vunpack.c.l.b16 %v246
    %v281 = vunpack.c.l.b16 %v247
    %v282 = vunpack.c.l.b16 %v248
    %v283 = vunpack.c.l.b16 %v249
    %v284 = vunpack.c.l.b16 %v250
    %v285 = vunpack.c.l.b16 %v251
    %v286 = vunpack.c.l.b16 %v252
    %v287 = vunpack.c.l.b16 %v253
    %v288 = vunpack.c.l.b16 %v254
    %v289 = vunpack.c.l.b16 %v255
    %v290 = vpack.c.b16 %v275, %v274
    %v291 = vpack.c.b16 %v277, %v276
    %v292 = vpack.c.b16 %v279, %v278
    %v293 = vpack.c.b16 %v281, %v280
    %v294 = vpack.c.b16 %v283, %v282
    %v295 = vpack.c.b16 %v285, %v284
    %v296 = vpack.c.b16 %v287, %v286
    %v297 = vpack.c.b16 %v289, %v288
    %306 = vmatprep.subr.bf16.mxu0 0
    %307 = vmatpush1.bf16.msra.mxu0 %v297
    %308 = vmatprep.subr.bf16.mxu0 0
    %309 = vmatpush1.bf16.msra.mxu0 %v296
    %310 = vmatprep.subr.bf16.mxu0 0
    %311 = vmatpush1.bf16.msra.mxu0 %v295
    %312 = vmatprep.subr.bf16.mxu0 0
    %313 = vmatpush1.bf16.msra.mxu0 %v294
    %314 = vmatprep.subr.bf16.mxu0 0
    %315 = vmatpush1.bf16.msra.mxu0 %v293
    %316 = vmatprep.subr.bf16.mxu0 0
    %317 = vmatpush1.bf16.msra.mxu0 %v292
    %318 = vmatprep.subr.bf16.mxu0 0
    %319 = vmatpush1.bf16.msra.mxu0 %v291
    %320 = vmatprep.subr.bf16.mxu0 0
    %321 = vmatpush1.bf16.msra.mxu0 %v290
    %322 = vmatprep.subr.bf16.mxu0 0
    %323 = vmatpush2.bf16.msra.mxu0 0
    %324 = vmatprep.subr.bf16.mxu0 0
    %325 = vmatpush2.bf16.msra.mxu0 0
    %326 = vmatprep.subr.bf16.mxu0 0
    %327 = vmatpush2.bf16.msra.mxu0 0
    %328 = vmatprep.subr.bf16.mxu0 0
    %329 = vmatpush2.bf16.msra.mxu0 0
    %330 = vmatprep.subr.bf16.mxu0 0
    %331 = vmatpush2.bf16.msra.mxu0 0
    %332 = vmatprep.subr.bf16.mxu0 0
    %333 = vmatpush2.bf16.msra.mxu0 0
    %334 = vmatprep.subr.bf16.mxu0 0
    %335 = vmatpush2.bf16.msra.mxu0 0
    %336 = vmatprep.subr.bf16.mxu0 0
    %337 = vmatpush2.bf16.msra.mxu0 0
    %338 = vmatprep.mubr.bf16.mxu0 0
    %339 = vmatmul.mubr.bf16.gmra.mxu0 %v257
    %v340 = vpop.f32.mrf.mxu0
    %v341 = vadd.f32 0.0, %v340
    %v342 = vpop.f32.mrf.mxu0
    %v343 = vpop.f32.mrf.mxu0
    %v344 = vpop.f32.mrf.mxu0
    %345 = vdwg.mxu0
    %v358 = vunpack.c.l.b16 %v228
    %v359 = vunpack.c.l.b16 %v229
    %v360 = vunpack.c.l.b16 %v230
    %v361 = vunpack.c.l.b16 %v231
    %v362 = vunpack.c.l.b16 %v232
    %v363 = vunpack.c.l.b16 %v233
    %v364 = vunpack.c.l.b16 %v234
    %v365 = vunpack.c.l.b16 %v235
    %v366 = vunpack.c.l.b16 %v236
    %v367 = vunpack.c.l.b16 %v237
    %v368 = vunpack.c.l.b16 %v238
    %v369 = vunpack.c.l.b16 %v239
    %v370 = vpack.c.b16 %v359, %v358
    %v371 = vpack.c.b16 %v361, %v360
    %v372 = vpack.c.b16 %v363, %v362
    %v373 = vpack.c.b16 %v365, %v364
    %v374 = vpack.c.b16 %v367, %v366
    %v375 = vpack.c.b16 %v369, %v368
    %vm382 = vcmask 785408
    %v384 = vsel %vm382, %v256, 0
    %386 = vmatprep.subr.bf16.mxu0 0
    %387 = vmatpush1.bf16.msra.mxu0 0
    %388 = vmatprep.subr.bf16.mxu0 0
    %389 = vmatpush1.bf16.msra.mxu0 0
    %390 = vmatprep.subr.bf16.mxu0 0
    %391 = vmatpush1.bf16.msra.mxu0 %v375
    %392 = vmatprep.subr.bf16.mxu0 0
    %393 = vmatpush1.bf16.msra.mxu0 %v374
    %394 = vmatprep.subr.bf16.mxu0 0
    %395 = vmatpush1.bf16.msra.mxu0 %v373
    %396 = vmatprep.subr.bf16.mxu0 0
    %397 = vmatpush1.bf16.msra.mxu0 %v372
    %398 = vmatprep.subr.bf16.mxu0 0
    %399 = vmatpush1.bf16.msra.mxu0 %v371
    %400 = vmatprep.subr.bf16.mxu0 0
    %401 = vmatpush1.bf16.msra.mxu0 %v370
    %402 = vmatprep.subr.bf16.mxu0 0
    %403 = vmatpush2.bf16.msra.mxu0 0
    %404 = vmatprep.subr.bf16.mxu0 0
    %405 = vmatpush2.bf16.msra.mxu0 0
    %406 = vmatprep.subr.bf16.mxu0 0
    %407 = vmatpush2.bf16.msra.mxu0 0
    %408 = vmatprep.subr.bf16.mxu0 0
    %409 = vmatpush2.bf16.msra.mxu0 0
    %410 = vmatprep.subr.bf16.mxu0 0
    %411 = vmatpush2.bf16.msra.mxu0 0
    %412 = vmatprep.subr.bf16.mxu0 0
    %413 = vmatpush2.bf16.msra.mxu0 0
    %414 = vmatprep.subr.bf16.mxu0 0
    %415 = vmatpush2.bf16.msra.mxu0 0
    %416 = vmatprep.subr.bf16.mxu0 0
    %417 = vmatpush2.bf16.msra.mxu0 0
    %418 = vmatprep.mubr.bf16.mxu0 0
    %419 = vmatmul.mubr.bf16.gmra.mxu0 %v384
    %v420 = vpop.f32.mrf.mxu0
    %v421 = vadd.f32 %v341, %v420
    %v422 = vpop.f32.mrf.mxu0
    %v423 = vpop.f32.mrf.mxu0
    %v424 = vpop.f32.mrf.mxu0
    %425 = vdwg.mxu0
    %v426 = vld [vmem:[%s5] sm:$0x1]
    %v428 = vlaneseq
    %v429 = vshrl.u32 %v428, 7
    %v430 = vsub.s32 0, %v429
    %v431 = vrot.slane %v426, %v430
    %v433 = vadd.f32 %v421, %v431
    %v434 = vpack.c.bf16 %v433, %v433
    %v435 = vld [vmem:[#allocation4] sm:$0xf]
    %v436 = vld [vmem:[#allocation4 + $0x4] sm:$0xf]
    %v437 = vld [vmem:[#allocation4 + $0x8] sm:$0xf]
    %v438 = vld [vmem:[#allocation4 + $0xc] sm:$0xf]
    %v439 = vld [vmem:[#allocation4 + $0x10] sm:$0xf]
    %v440 = vld [vmem:[#allocation4 + $0x14] sm:$0xf]
    %v441 = vld [vmem:[#allocation4 + $0x18] sm:$0xf]
    %v442 = vld [vmem:[#allocation4 + $0x1c] sm:$0xf]
    %v443 = vld [vmem:[#allocation4 + $0x20] sm:$0xf]
    %v444 = vld [vmem:[#allocation4 + $0x24] sm:$0xf]
    %v445 = vld [vmem:[#allocation4 + $0x28] sm:$0xf]
    %v446 = vld [vmem:[#allocation4 + $0x2c] sm:$0xf]
    %v459 = vunpack.c.l.b16 %v435
    %v460 = vunpack.c.l.b16 %v436
    %v461 = vunpack.c.l.b16 %v437
    %v462 = vunpack.c.l.b16 %v438
    %v463 = vunpack.c.l.b16 %v439
    %v464 = vunpack.c.l.b16 %v440
    %v465 = vunpack.c.l.b16 %v441
    %v466 = vunpack.c.l.b16 %v442
    %v467 = vunpack.c.l.b16 %v443
    %v468 = vunpack.c.l.b16 %v444
    %v469 = vunpack.c.l.b16 %v445
    %v470 = vunpack.c.l.b16 %v446
    %v471 = vpack.c.b16 %v460, %v459
    %v472 = vpack.c.b16 %v462, %v461
    %v473 = vpack.c.b16 %v464, %v463
    %v474 = vpack.c.b16 %v466, %v465
    %v475 = vpack.c.b16 %v468, %v467
    %v476 = vpack.c.b16 %v470, %v469
    %v484 = vsel %vm382, %v434, 0
    %486 = vmatprep.subr.bf16.mxu0 0
    %487 = vmatpush1.bf16.msra.mxu0 0
    %488 = vmatprep.subr.bf16.mxu0 0
    %489 = vmatpush1.bf16.msra.mxu0 0
    %490 = vmatprep.subr.bf16.mxu0 0
    %491 = vmatpush1.bf16.msra.mxu0 %v476
    %492 = vmatprep.subr.bf16.mxu0 0
    %493 = vmatpush1.bf16.msra.mxu0 %v475
    %494 = vmatprep.subr.bf16.mxu0 0
    %495 = vmatpush1.bf16.msra.mxu0 %v474
    %496 = vmatprep.subr.bf16.mxu0 0
    %497 = vmatpush1.bf16.msra.mxu0 %v473
    %498 = vmatprep.subr.bf16.mxu0 0
    %499 = vmatpush1.bf16.msra.mxu0 %v472
    %500 = vmatprep.subr.bf16.mxu0 0
    %501 = vmatpush1.bf16.msra.mxu0 %v471
    %502 = vmatprep.subr.bf16.mxu0 0
    %503 = vmatpush2.bf16.msra.mxu0 0
    %504 = vmatprep.subr.bf16.mxu0 0
    %505 = vmatpush2.bf16.msra.mxu0 0
    %506 = vmatprep.subr.bf16.mxu0 0
    %507 = vmatpush2.bf16.msra.mxu0 0
    %508 = vmatprep.subr.bf16.mxu0 0
    %509 = vmatpush2.bf16.msra.mxu0 0
    %510 = vmatprep.subr.bf16.mxu0 0
    %511 = vmatpush2.bf16.msra.mxu0 0
    %512 = vmatprep.subr.bf16.mxu0 0
    %513 = vmatpush2.bf16.msra.mxu0 0
    %514 = vmatprep.subr.bf16.mxu0 0
    %515 = vmatpush2.bf16.msra.mxu0 0
    %516 = vmatprep.subr.bf16.mxu0 0
    %517 = vmatpush2.bf16.msra.mxu0 0
    %518 = vmatprep.mubr.bf16.mxu0 0
    %519 = vmatmul.mubr.bf16.gmra.mxu0 %v484
    %v520 = vpop.f32.mrf.mxu0
    %v521 = vadd.f32 %v180, %v520
    %v522 = vpop.f32.mrf.mxu0
    %v523 = vpop.f32.mrf.mxu0
    %v524 = vpop.f32.mrf.mxu0
    %525 = vdwg.mxu0
    %v526 = vmax.f32 %v521, 0.0
    %s527 = scalar_lea.vmem [#allocation6], 112
    %v528 = vld [vmem:[%s527] sm:$0xf]
    %v529 = vld [vmem:[%s527 + $0x4] sm:$0xf]
    %v530 = vld [vmem:[%s527 + $0x8] sm:$0xf]
    %v531 = vld [vmem:[%s527 + $0xc] sm:$0xf]
    %v532 = vld [vmem:[%s527 + $0x10] sm:$0xf]
    %v533 = vld [vmem:[%s527 + $0x14] sm:$0xf]
    %v534 = vld [vmem:[%s527 + $0x18] sm:$0xf]
    %v535 = vld [vmem:[%s527 + $0x1c] sm:$0xf]
    %v536 = vld [vmem:[%s527 + $0x20] sm:$0xf]
    %v537 = vld [vmem:[%s527 + $0x24] sm:$0xf]
    %v538 = vld [vmem:[%s527 + $0x28] sm:$0xf]
    %v539 = vld [vmem:[%s527 + $0x2c] sm:$0xf]
    %v540 = vld [vmem:[%s527 + $0x30] sm:$0xf]
    %v541 = vld [vmem:[%s527 + $0x34] sm:$0xf]
    %v542 = vld [vmem:[%s527 + $0x38] sm:$0xf]
    %v543 = vld [vmem:[%s527 + $0x3c] sm:$0xf]
    %v544 = vld [vmem:[%s527 + $0x40] sm:$0xf]
    %v545 = vld [vmem:[%s527 + $0x44] sm:$0xf]
    %v546 = vld [vmem:[%s527 + $0x48] sm:$0xf]
    %v547 = vld [vmem:[%s527 + $0x4c] sm:$0xf]
    %v548 = vld [vmem:[%s527 + $0x50] sm:$0xf]
    %v549 = vld [vmem:[%s527 + $0x54] sm:$0xf]
    %v550 = vld [vmem:[%s527 + $0x58] sm:$0xf]
    %v551 = vld [vmem:[%s527 + $0x5c] sm:$0xf]
    %v552 = vld [vmem:[%s527 + $0x60] sm:$0xf]
    %v553 = vld [vmem:[%s527 + $0x64] sm:$0xf]
    %v554 = vld [vmem:[%s527 + $0x68] sm:$0xf]
    %v555 = vld [vmem:[%s527 + $0x6c] sm:$0xf]
    %v556 = vpack.c.bf16 %v526, %v526
    %v573 = vunpack.c.l.b16 %v540
    %v574 = vunpack.c.l.b16 %v541
    %v575 = vunpack.c.l.b16 %v542
    %v576 = vunpack.c.l.b16 %v543
    %v577 = vunpack.c.l.b16 %v544
    %v578 = vunpack.c.l.b16 %v545
    %v579 = vunpack.c.l.b16 %v546
    %v580 = vunpack.c.l.b16 %v547
    %v581 = vunpack.c.l.b16 %v548
    %v582 = vunpack.c.l.b16 %v549
    %v583 = vunpack.c.l.b16 %v550
    %v584 = vunpack.c.l.b16 %v551
    %v585 = vunpack.c.l.b16 %v552
    %v586 = vunpack.c.l.b16 %v553
    %v587 = vunpack.c.l.b16 %v554
    %v588 = vunpack.c.l.b16 %v555
    %v589 = vpack.c.b16 %v574, %v573
    %v590 = vpack.c.b16 %v576, %v575
    %v591 = vpack.c.b16 %v578, %v577
    %v592 = vpack.c.b16 %v580, %v579
    %v593 = vpack.c.b16 %v582, %v581
    %v594 = vpack.c.b16 %v584, %v583
    %v595 = vpack.c.b16 %v586, %v585
    %v596 = vpack.c.b16 %v588, %v587
    %605 = vmatprep.subr.bf16.mxu0 0
    %606 = vmatpush1.bf16.msra.mxu0 %v596
    %607 = vmatprep.subr.bf16.mxu0 0
    %608 = vmatpush1.bf16.msra.mxu0 %v595
    %609 = vmatprep.subr.bf16.mxu0 0
    %610 = vmatpush1.bf16.msra.mxu0 %v594
    %611 = vmatprep.subr.bf16.mxu0 0
    %612 = vmatpush1.bf16.msra.mxu0 %v593
    %613 = vmatprep.subr.bf16.mxu0 0
    %614 = vmatpush1.bf16.msra.mxu0 %v592
    %615 = vmatprep.subr.bf16.mxu0 0
    %616 = vmatpush1.bf16.msra.mxu0 %v591
    %617 = vmatprep.subr.bf16.mxu0 0
    %618 = vmatpush1.bf16.msra.mxu0 %v590
    %619 = vmatprep.subr.bf16.mxu0 0
    %620 = vmatpush1.bf16.msra.mxu0 %v589
    %621 = vmatprep.subr.bf16.mxu0 0
    %622 = vmatpush2.bf16.msra.mxu0 0
    %623 = vmatprep.subr.bf16.mxu0 0
    %624 = vmatpush2.bf16.msra.mxu0 0
    %625 = vmatprep.subr.bf16.mxu0 0
    %626 = vmatpush2.bf16.msra.mxu0 0
    %627 = vmatprep.subr.bf16.mxu0 0
    %628 = vmatpush2.bf16.msra.mxu0 0
    %629 = vmatprep.subr.bf16.mxu0 0
    %630 = vmatpush2.bf16.msra.mxu0 0
    %631 = vmatprep.subr.bf16.mxu0 0
    %632 = vmatpush2.bf16.msra.mxu0 0
    %633 = vmatprep.subr.bf16.mxu0 0
    %634 = vmatpush2.bf16.msra.mxu0 0
    %635 = vmatprep.subr.bf16.mxu0 0
    %636 = vmatpush2.bf16.msra.mxu0 0
    %637 = vmatprep.mubr.bf16.mxu0 0
    %638 = vmatmul.mubr.bf16.gmra.mxu0 %v556
    %v639 = vpop.f32.mrf.mxu0
    %v640 = vadd.f32 0.0, %v639
    %v641 = vpop.f32.mrf.mxu0
    %v642 = vpop.f32.mrf.mxu0
    %v643 = vpop.f32.mrf.mxu0
    %644 = vdwg.mxu0
    %v657 = vunpack.c.l.b16 %v528
    %v658 = vunpack.c.l.b16 %v529
    %v659 = vunpack.c.l.b16 %v530
    %v660 = vunpack.c.l.b16 %v531
    %v661 = vunpack.c.l.b16 %v532
    %v662 = vunpack.c.l.b16 %v533
    %v663 = vunpack.c.l.b16 %v534
    %v664 = vunpack.c.l.b16 %v535
    %v665 = vunpack.c.l.b16 %v536
    %v666 = vunpack.c.l.b16 %v537
    %v667 = vunpack.c.l.b16 %v538
    %v668 = vunpack.c.l.b16 %v539
    %v669 = vpack.c.b16 %v658, %v657
    %v670 = vpack.c.b16 %v660, %v659
    %v671 = vpack.c.b16 %v662, %v661
    %v672 = vpack.c.b16 %v664, %v663
    %v673 = vpack.c.b16 %v666, %v665
    %v674 = vpack.c.b16 %v668, %v667
    %681 = vmatprep.subr.bf16.mxu0 0
    %682 = vmatpush1.bf16.msra.mxu0 0
    %683 = vmatprep.subr.bf16.mxu0 0
    %684 = vmatpush1.bf16.msra.mxu0 0
    %685 = vmatprep.subr.bf16.mxu0 0
    %686 = vmatpush1.bf16.msra.mxu0 %v674
    %687 = vmatprep.subr.bf16.mxu0 0
    %688 = vmatpush1.bf16.msra.mxu0 %v673
    %689 = vmatprep.subr.bf16.mxu0 0
    %690 = vmatpush1.bf16.msra.mxu0 %v672
    %691 = vmatprep.subr.bf16.mxu0 0
    %692 = vmatpush1.bf16.msra.mxu0 %v671
    %693 = vmatprep.subr.bf16.mxu0 0
    %694 = vmatpush1.bf16.msra.mxu0 %v670
    %695 = vmatprep.subr.bf16.mxu0 0
    %696 = vmatpush1.bf16.msra.mxu0 %v669
    %697 = vmatprep.subr.bf16.mxu0 0
    %698 = vmatpush2.bf16.msra.mxu0 0
    %699 = vmatprep.subr.bf16.mxu0 0
    %700 = vmatpush2.bf16.msra.mxu0 0
    %701 = vmatprep.subr.bf16.mxu0 0
    %702 = vmatpush2.bf16.msra.mxu0 0
    %703 = vmatprep.subr.bf16.mxu0 0
    %704 = vmatpush2.bf16.msra.mxu0 0
    %705 = vmatprep.subr.bf16.mxu0 0
    %706 = vmatpush2.bf16.msra.mxu0 0
    %707 = vmatprep.subr.bf16.mxu0 0
    %708 = vmatpush2.bf16.msra.mxu0 0
    %709 = vmatprep.subr.bf16.mxu0 0
    %710 = vmatpush2.bf16.msra.mxu0 0
    %711 = vmatprep.subr.bf16.mxu0 0
    %712 = vmatpush2.bf16.msra.mxu0 0
    %713 = vmatprep.mubr.bf16.mxu0 0
    %714 = vmatmul.mubr.bf16.gmra.mxu0 %v484
    %v715 = vpop.f32.mrf.mxu0
    %v716 = vadd.f32 %v640, %v715
    %v717 = vpop.f32.mrf.mxu0
    %v718 = vpop.f32.mrf.mxu0
    %v719 = vpop.f32.mrf.mxu0
    %720 = vdwg.mxu0
    %s721 = scalar_lea.vmem %s5, 1
    %v722 = vld [vmem:[%s721] sm:$0x1]
    %v724 = vlaneseq
    %v725 = vshrl.u32 %v724, 7
    %v726 = vsub.s32 0, %v725
    %v727 = vrot.slane %v722, %v726
    %v729 = vadd.f32 %v716, %v727
    %s730 = scalar_lea.vmem %s5, 2
    %v731 = vld [vmem:[%s730] sm:$0x1]
    %v732 = vpack.c.bf16 %v729, %v729
    %v733 = vld [vmem:[#allocation7] sm:$0xf]
    %v734 = vld [vmem:[#allocation7 + $0x4] sm:$0xf]
    %v735 = vld [vmem:[#allocation7 + $0x8] sm:$0xf]
    %v736 = vld [vmem:[#allocation7 + $0xc] sm:$0xf]
    %v737 = vld [vmem:[#allocation7 + $0x10] sm:$0xf]
    %v738 = vld [vmem:[#allocation7 + $0x14] sm:$0xf]
    %v739 = vld [vmem:[#allocation7 + $0x18] sm:$0xf]
    %v740 = vld [vmem:[#allocation7 + $0x1c] sm:$0xf]
    %v741 = vld [vmem:[#allocation7 + $0x20] sm:$0xf]
    %v742 = vld [vmem:[#allocation7 + $0x24] sm:$0xf]
    %v743 = vld [vmem:[#allocation7 + $0x28] sm:$0xf]
    %v744 = vld [vmem:[#allocation7 + $0x2c] sm:$0xf]
    %v746 = vlaneseq
    %v747 = vshrl.u32 %v746, 7
    %v748 = vsub.s32 0, %v747
    %v749 = vrot.slane %v731, %v748
    %v763 = vunpack.c.l.b16 %v733
    %v764 = vunpack.c.l.b16 %v734
    %v765 = vunpack.c.l.b16 %v735
    %v766 = vunpack.c.l.b16 %v736
    %v767 = vunpack.c.l.b16 %v737
    %v768 = vunpack.c.l.b16 %v738
    %v769 = vunpack.c.l.b16 %v739
    %v770 = vunpack.c.l.b16 %v740
    %v771 = vunpack.c.l.b16 %v741
    %v772 = vunpack.c.l.b16 %v742
    %v773 = vunpack.c.l.b16 %v743
    %v774 = vunpack.c.l.b16 %v744
    %v775 = vpack.c.b16 %v764, %v763
    %v776 = vpack.c.b16 %v766, %v765
    %v777 = vpack.c.b16 %v768, %v767
    %v778 = vpack.c.b16 %v770, %v769
    %v779 = vpack.c.b16 %v772, %v771
    %v780 = vpack.c.b16 %v774, %v773
    %v788 = vsel %vm382, %v732, 0
    %790 = vmatprep.subr.bf16.mxu0 0
    %791 = vmatpush1.bf16.msra.mxu0 0
    %792 = vmatprep.subr.bf16.mxu0 0
    %793 = vmatpush1.bf16.msra.mxu0 0
    %794 = vmatprep.subr.bf16.mxu0 0
    %795 = vmatpush1.bf16.msra.mxu0 %v780
    %796 = vmatprep.subr.bf16.mxu0 0
    %797 = vmatpush1.bf16.msra.mxu0 %v779
    %798 = vmatprep.subr.bf16.mxu0 0
    %799 = vmatpush1.bf16.msra.mxu0 %v778
    %800 = vmatprep.subr.bf16.mxu0 0
    %801 = vmatpush1.bf16.msra.mxu0 %v777
    %802 = vmatprep.subr.bf16.mxu0 0
    %803 = vmatpush1.bf16.msra.mxu0 %v776
    %804 = vmatprep.subr.bf16.mxu0 0
    %805 = vmatpush1.bf16.msra.mxu0 %v775
    %806 = vmatprep.subr.bf16.mxu0 0
    %807 = vmatpush2.bf16.msra.mxu0 0
    %808 = vmatprep.subr.bf16.mxu0 0
    %809 = vmatpush2.bf16.msra.mxu0 0
    %810 = vmatprep.subr.bf16.mxu0 0
    %811 = vmatpush2.bf16.msra.mxu0 0
    %812 = vmatprep.subr.bf16.mxu0 0
    %813 = vmatpush2.bf16.msra.mxu0 0
    %814 = vmatprep.subr.bf16.mxu0 0
    %815 = vmatpush2.bf16.msra.mxu0 0
    %816 = vmatprep.subr.bf16.mxu0 0
    %817 = vmatpush2.bf16.msra.mxu0 0
    %818 = vmatprep.subr.bf16.mxu0 0
    %819 = vmatpush2.bf16.msra.mxu0 0
    %820 = vmatprep.subr.bf16.mxu0 0
    %821 = vmatpush2.bf16.msra.mxu0 0
    %822 = vmatprep.mubr.bf16.mxu0 0
    %823 = vmatmul.mubr.bf16.gmra.mxu0 %v788
    %v824 = vpop.f32.mrf.mxu0
    %v825 = vadd.f32 %v749, %v824
    %v826 = vpop.f32.mrf.mxu0
    %v827 = vpop.f32.mrf.mxu0
    %v828 = vpop.f32.mrf.mxu0
    %829 = vdwg.mxu0
    %vm830 = vcmask 64512
    %831 = vst.msk [vmem:[%s7] sm:$0xff] %vm830, %v825
    // Predicated region
    $region46: #{_lambda_.1} parent=1 // pred_check
      _
    $region47: #{_lambda_.1} parent=1 // pred_check_branch
      %833 = sbr.rel (0) target = $region49
    $region48: #{_lambda_.1} parent=1 // pred_region
      _
    $region49: #{_lambda_.1} parent=1 // pred_fallthru
      _
    // Predicated region
    $region50: #{_lambda_.1} parent=1 // pred_check
      _
    $region51: #{_lambda_.1} parent=1 // pred_check_branch
      %835 = sbr.rel (0) target = $region53
    $region52: #{_lambda_.1} parent=1 // pred_region
      _
    $region53: #{_lambda_.1} parent=1 // pred_fallthru
      _
    %836 = vsyncpa [#allocation3], 1
    %837 = vsyncpa [#allocation5], 1
    %838 = vsyncpa [#allocation8], 1

</llo_original>
